<compile_context>
chip_gen: v6e
topology: v6e:2x2x1
jax: 0.10.0
libtpu: 0.0.40
codegen_flags: <defaults>
</compile_context>

<pallas_src>
import functools

import jax
import jax.numpy as jnp
from jax import lax
from jax.experimental import pallas as pl
from jax.experimental.pallas import tpu as pltpu

F_IN, F_HID, F_OUT = 5, 16, 3
_LANES = 128


def _mlp_kernel(xT_ref, w1_ref, b1_ref, w2_ref, b2_ref, oT_ref):
    # xT_ref: (5, TB)   w1_ref: (16, 5)  b1_ref: (16, 1)
    # w2_ref: (3, 16)   b2_ref: (3, 1)   oT_ref: (3, TB)
    xT = xT_ref[...]
    h = jnp.dot(w1_ref[...], xT,
                preferred_element_type=jnp.float32,
                precision=lax.Precision.HIGHEST)                 # (16, TB)
    h = jnp.maximum(h + b1_ref[...], 0.0)                        # ReLU, bias bcast over lanes
    y = jnp.dot(w2_ref[...], h,
                preferred_element_type=jnp.float32,
                precision=lax.Precision.HIGHEST)                 # (3, TB)
    oT_ref[...] = (y + b2_ref[...]).astype(oT_ref.dtype)


def _choose_tiling(batch, tb, min_steps):
    """Pick (TB, Bp, n_steps): lane-aligned tile, >= min_steps grid steps,
    padding waste bounded by ~1 tile."""
    b128 = pl.cdiv(batch, _LANES) * _LANES
    n_steps = max(min_steps, pl.cdiv(b128, tb))
    tile = pl.cdiv(pl.cdiv(b128, n_steps), _LANES) * _LANES
    return tile, n_steps * tile, n_steps


def _classifier_padded(xT, w1, b1, w2, b2, tile, n_steps):
    """xT: (5, Bp) with Bp == n_steps * tile.  Returns (3, Bp) f32 logits."""
    bp = xT.shape[1]

    flops = 2 * bp * (F_IN * F_HID + F_HID * F_OUT)
    bytes_accessed = 4 * (bp * (F_IN + F_OUT)
                          + F_HID * F_IN + F_HID + F_OUT * F_HID + F_OUT)

    # Double-buffered (5,TB) + (3,TB) f32 tiles, sublane-padded to 8 rows each:
    # 2 bufs * 2 arrays * 8 * TB * 4 B = 128 * TB bytes, plus tiny weights + headroom.
    vmem_limit = min(max(128 * tile + (4 << 20), 16 << 20), 48 << 20)

    return pl.pallas_call(
        _mlp_kernel,
        out_shape=jax.ShapeDtypeStruct((F_OUT, bp), jnp.float32),
        grid_spec=pltpu.PrefetchScalarGridSpec(
            num_scalar_prefetch=0,
            grid=(n_steps,),
            in_specs=[
                pl.BlockSpec((F_IN, tile), lambda i: (0, i)),     # x tile, lane-dense
                pl.BlockSpec((F_HID, F_IN), lambda i: (0, 0)),    # weights stay resident
                pl.BlockSpec((F_HID, 1), lambda i: (0, 0)),
                pl.BlockSpec((F_OUT, F_HID), lambda i: (0, 0)),
                pl.BlockSpec((F_OUT, 1), lambda i: (0, 0)),
            ],
            out_specs=pl.BlockSpec((F_OUT, tile), lambda i: (0, i)),
        ),
        compiler_params=pltpu.CompilerParams(
            dimension_semantics=("parallel",),
            vmem_limit_bytes=vmem_limit),
        cost_estimate=pl.CostEstimate(
            flops=flops, transcendentals=0, bytes_accessed=bytes_accessed),
    )(xT, w1, b1, w2, b2)


@functools.partial(jax.jit, static_argnames=("tb", "min_steps"))
def plot_type_classifier_lane_major(xT, w1, b1, w2, b2, *, tb=65536, min_steps=2):
    """Lane-major API: xT is (5, B), returns (3, B).  Avoids the pad/transpose
    layout passes entirely when producer/consumer can use this layout."""
    batch = xT.shape[1]
    tile, bp, n_steps = _choose_tiling(batch, tb, min_steps)
    xTp = jnp.pad(xT, ((0, 0), (0, bp - batch)))
    yTp = _classifier_padded(xTp, w1, b1, w2, b2, tile, n_steps)
    return yTp[:, :batch]


@functools.partial(jax.jit, static_argnames=("tb", "min_steps"))
def plot_type_classifier(x, w1, b1, w2, b2, *, tb=65536, min_steps=2):
    """PyTorch-layout API: x is (B, 5) f32, returns (B, 3) f32 logits
    (same semantics as PlotTypeClassifier.forward).  jit fuses the layout passes."""
    batch = x.shape[0]
    tile, bp, n_steps = _choose_tiling(batch, tb, min_steps)
    xTp = jnp.pad(x, ((0, bp - batch), (0, 0))).T                 # (5, Bp), fused under jit
    yTp = _classifier_padded(xTp, w1, b1, w2, b2, tile, n_steps)
    return yTp[:, :batch].T                                       # (B, 3)


def init_params(key):
    """PyTorch nn.Linear-style init; weights in (out_features, in_features),
    biases as (out_features, 1) columns (kernel-friendly, no per-call transposes)."""
    k1, k2, k3, k4 = jax.random.split(key, 4)
    bound1 = 1.0 / jnp.sqrt(5.0)
    bound2 = 1.0 / jnp.sqrt(16.0)
    w1 = jax.random.uniform(k1, (F_HID, F_IN), jnp.float32, -bound1, bound1)
    b1 = jax.random.uniform(k2, (F_HID, 1), jnp.float32, -bound1, bound1)
    w2 = jax.random.uniform(k3, (F_OUT, F_HID), jnp.float32, -bound2, bound2)
    b2 = jax.random.uniform(k4, (F_OUT, 1), jnp.float32, -bound2, bound2)
    return w1, b1, w2, b2


if __name__ == "__main__":
    key = jax.random.PRNGKey(0)
    kx, kp = jax.random.split(key)

    B = 2
    x = jax.random.normal(kx, (B, F_IN), jnp.float32)
    w1, b1, w2, b2 = init_params(kp)

    # Plain-JAX reference: relu(x @ W1.T + b1) @ W2.T + b2  (PyTorch convention).
    ref = jnp.maximum(x @ w1.T + b1[:, 0], 0.0) @ w2.T + b2[:, 0]

    # PyTorch-layout path.
    out = jax.block_until_ready(plot_type_classifier(x, w1, b1, w2, b2))
    assert out.shape == (B, F_OUT)
    assert jnp.allclose(out, ref, atol=1e-5, rtol=1e-5)

    # Lane-major path (layout plumbed to the API boundary).
    outT = jax.block_until_ready(
        plot_type_classifier_lane_major(x.T, w1, b1, w2, b2))
    assert outT.shape == (F_OUT, B)
    assert jnp.allclose(outT.T, ref, atol=1e-5, rtol=1e-5)

    print("KERNEL_OK")
</pallas_src>

<mosaic_0001>
module attributes {stable_mosaic.version = 11 : i64} {
  func.func @_mlp_kernel(%arg0: i32, %arg1: memref<5x128xf32, #tpu.memory_space<vmem>>, %arg2: memref<16x5xf32, #tpu.memory_space<vmem>>, %arg3: memref<16x1xf32, #tpu.memory_space<vmem>>, %arg4: memref<3x16xf32, #tpu.memory_space<vmem>>, %arg5: memref<3x1xf32, #tpu.memory_space<vmem>>, %arg6: memref<3x128xf32, #tpu.memory_space<vmem>>) attributes {dimension_semantics = [#tpu.dimension_semantics<parallel>], iteration_bounds = array<i64: 2>, scalar_prefetch = 0 : i64, scratch_operands = 0 : i64, tpu.core_type = #tpu.core_type<tc>, window_params = [{transform_indices = @transform_0, window_bounds = array<i64: 5, 128>}, {pipeline_mode = #tpu.pipeline_mode<synchronous>, transform_indices = @transform_1, window_bounds = array<i64: 16, 5>}, {pipeline_mode = #tpu.pipeline_mode<synchronous>, transform_indices = @transform_2, window_bounds = array<i64: 16, 1>}, {pipeline_mode = #tpu.pipeline_mode<synchronous>, transform_indices = @transform_3, window_bounds = array<i64: 3, 16>}, {pipeline_mode = #tpu.pipeline_mode<synchronous>, transform_indices = @transform_4, window_bounds = array<i64: 3, 1>}, {transform_indices = @transform_5, window_bounds = array<i64: 3, 128>}]} {
    %c0 = arith.constant 0 : index
    %c0_0 = arith.constant 0 : index
    %0 = vector.load %arg1[%c0, %c0_0] : memref<5x128xf32, #tpu.memory_space<vmem>>, vector<5x128xf32>
    %c0_1 = arith.constant 0 : index
    %c0_2 = arith.constant 0 : index
    %1 = vector.load %arg2[%c0_1, %c0_2] : memref<16x5xf32, #tpu.memory_space<vmem>>, vector<16x5xf32>
    %cst = arith.constant dense<0.000000e+00> : vector<16x128xf32>
    %2 = tpu.matmul %1, %0, %cst {dimension_numbers = #tpu.dot_dimension_numbers<[1], [0], [0], [1], [0, 0, 1, 1], [], []>, precision = #tpu.contract_precision<fp32>} : vector<16x5xf32>, vector<5x128xf32>, vector<16x128xf32> -> vector<16x128xf32>
    %c0_3 = arith.constant 0 : index
    %c0_4 = arith.constant 0 : index
    %3 = vector.load %arg3[%c0_3, %c0_4] : memref<16x1xf32, #tpu.memory_space<vmem>>, vector<16x1xf32>
    %4 = vector.broadcast %3 : vector<16x1xf32> to vector<16x128xf32>
    %5 = arith.addf %2, %4 : vector<16x128xf32>
    %cst_5 = arith.constant 0.000000e+00 : f32
    %6 = vector.broadcast %cst_5 : f32 to vector<16x128xf32>
    %7 = arith.maximumf %5, %6 : vector<16x128xf32>
    %c0_6 = arith.constant 0 : index
    %c0_7 = arith.constant 0 : index
    %8 = vector.load %arg4[%c0_6, %c0_7] : memref<3x16xf32, #tpu.memory_space<vmem>>, vector<3x16xf32>
    %cst_8 = arith.constant dense<0.000000e+00> : vector<3x128xf32>
    %9 = tpu.matmul %8, %7, %cst_8 {dimension_numbers = #tpu.dot_dimension_numbers<[1], [0], [0], [1], [0, 0, 1, 1], [], []>, precision = #tpu.contract_precision<fp32>} : vector<3x16xf32>, vector<16x128xf32>, vector<3x128xf32> -> vector<3x128xf32>
    %c0_9 = arith.constant 0 : index
    %c0_10 = arith.constant 0 : index
    %10 = vector.load %arg5[%c0_9, %c0_10] : memref<3x1xf32, #tpu.memory_space<vmem>>, vector<3x1xf32>
    %11 = vector.broadcast %10 : vector<3x1xf32> to vector<3x128xf32>
    %12 = arith.addf %9, %11 : vector<3x128xf32>
    %c0_11 = arith.constant 0 : index
    %c0_12 = arith.constant 0 : index
    %13 = vector.load %arg6[%c0_11, %c0_12] : memref<3x128xf32, #tpu.memory_space<vmem>>, vector<3x128xf32>
    tpu.vector_store %arg6[%c0_11, %c0_12], %12 {strides = array<i32>} : memref<3x128xf32, #tpu.memory_space<vmem>>, vector<3x128xf32>,
    return
  }
  func.func @transform_0(%arg0: i32) -> (i32, i32) {
    %c0_i32 = arith.constant 0 : i32
    %c0_i32_0 = arith.constant 0 : i32
    return %c0_i32, %arg0 : i32, i32
  }
  func.func @transform_1(%arg0: i32) -> (i32, i32) {
    %c0_i32 = arith.constant 0 : i32
    %c0_i32_0 = arith.constant 0 : i32
    %c0_i32_1 = arith.constant 0 : i32
    return %c0_i32, %c0_i32_0 : i32, i32
  }
  func.func @transform_2(%arg0: i32) -> (i32, i32) {
    %c0_i32 = arith.constant 0 : i32
    %c0_i32_0 = arith.constant 0 : i32
    %c0_i32_1 = arith.constant 0 : i32
    return %c0_i32, %c0_i32_0 : i32, i32
  }
  func.func @transform_3(%arg0: i32) -> (i32, i32) {
    %c0_i32 = arith.constant 0 : i32
    %c0_i32_0 = arith.constant 0 : i32
    %c0_i32_1 = arith.constant 0 : i32
    return %c0_i32, %c0_i32_0 : i32, i32
  }
  func.func @transform_4(%arg0: i32) -> (i32, i32) {
    %c0_i32 = arith.constant 0 : i32
    %c0_i32_0 = arith.constant 0 : i32
    %c0_i32_1 = arith.constant 0 : i32
    return %c0_i32, %c0_i32_0 : i32, i32
  }
  func.func @transform_5(%arg0: i32) -> (i32, i32) {
    %c0_i32 = arith.constant 0 : i32
    %c0_i32_0 = arith.constant 0 : i32
    return %c0_i32, %arg0 : i32, i32
  }
}

</mosaic_0001>

<llo_original>
// kernel: plot_type_classifier.1
$region0: #{plot_type_classifier.1}
  #allocation0 [shape = 'u32[]', space=smem, size = 0x4, offset = 0x4, fixed_abs, tag = 'smem constant byte address 0x4 - core index']
  #allocation1 [shape = 'u32[144,128]{1,0:T(1,128)}', space=vmem, size = 0x12000, scoped, tag = 'internal scratch']
  %s0 = inlined_call_operand.vmem [shape: f32[5,256], index: 0, kind: input, shape index: {}]
  %s1 = inlined_call_operand.vmem [shape: f32[16,5], index: 1, kind: input, shape index: {}]
  %s2 = inlined_call_operand.vmem [shape: f32[16,1], index: 2, kind: input, shape index: {}]
  %s3 = inlined_call_operand.vmem [shape: f32[3,16], index: 3, kind: input, shape index: {}]
  %s4 = inlined_call_operand.vmem [shape: f32[3,1], index: 4, kind: input, shape index: {}]
  %s5 = inlined_call_operand.vmem [shape: f32[3,256], index: 5, kind: output, shape index: {}]
  %s6 = sld [smem:[#allocation0]]
  $region53: #{plot_type_classifier.1} parent=0
    _
  %s8 = ssub.s32 1, %s6
  %s9 = scalar_select 0, %s8, %s6
  loop: start=0, step=1, limit=4
  $region2: #{plot_type_classifier.1} parent=0 // loop_pre_header
    _
  $region3: #{plot_type_classifier.1} parent=0 // loop_header
    %s11 = sphi 0, %s15
    %p12 = scmp.ge.s32.totalorder %s11, 4
    %s21 = sphi 0, %s23
    %s24 = sphi 0, %s21
    %s25 = sphi 0, %s24
    %s41 = sphi 0, %s25
    %s45 = sphi 0, %s45
    %s47 = sphi 0, %s45
    %s48 = sphi 0, %s47
    %s62 = sphi 0, %s48
    %s66 = sphi 0, %s66
    %s68 = sphi 0, %s66
    %s69 = sphi 0, %s68
    %s83 = sphi 0, %s69
    %s87 = sphi 0, %s87
    %s89 = sphi 0, %s87
    %s90 = sphi 0, %s89
    %s104 = sphi 0, %s90
    %s108 = sphi 0, %s108
    %s110 = sphi 0, %s108
    %s111 = sphi 0, %s110
    %s125 = sphi 0, %s111
    %s131 = sphi 0, %s133
    %s134 = sphi 0, %s131
    %s135 = sphi 0, %s134
    %s151 = sphi 0, %s135
  $region4: #{plot_type_classifier.1} parent=0 // loop_header_branch
    %14 = sbr.rel (%p12) target = $region8
  $region5: #{plot_type_classifier.1} parent=0 // loop_body
    %s16 = ssub.s32 %s11, 1
    %s17 = ssub.s32 %s11, 2
    %s18 = sadd.s32 %s11, 1
    %s19 = ssub.s32 %s11, %s18
    %p20 = scmp.eq.s32.totalorder %s19, 0
    %s22 = sadd.s32 %s21, 1
    %s23 = scalar_select %p20, %s21, %s22
    %p26 = pneg %p20
    %p27 = scmp.eq.s32.totalorder %s11, 1
    %p28 = por %p26, %p27
    %p29 = scmp.ne.s32.totalorder %s21, %s24
    %p30 = scmp.eq.s32.totalorder %s11, 0
    %p31 = por %p29, %p30
    %p32 = scmp.ne.s32.totalorder %s21, %s24
    %p33 = scmp.eq.s32.totalorder %s16, 1
    %p34 = por %p32, %p33
    %p35 = scmp.ne.s32.totalorder %s24, %s25
    %p36 = scmp.eq.s32.totalorder %s16, 0
    %p37 = por %p35, %p36
    %p38 = scmp.ne.s32.totalorder %s24, %s25
    %p39 = scmp.eq.s32.totalorder %s17, 1
    %p40 = por %p38, %p39
    %p42 = scmp.ne.s32.totalorder %s25, %s41
    %p43 = scmp.eq.s32.totalorder %s17, 0
    %p44 = por %p42, %p43
    %s46 = sadd.s32 %s45, 1
    %p49 = scmp.eq.s32.totalorder %s11, 1
    %p50 = scmp.ne.s32.totalorder %s45, %s47
    %p51 = scmp.eq.s32.totalorder %s11, 0
    %p52 = por %p50, %p51
    %p53 = scmp.ne.s32.totalorder %s45, %s47
    %p54 = scmp.eq.s32.totalorder %s16, 1
    %p55 = por %p53, %p54
    %p56 = scmp.ne.s32.totalorder %s47, %s48
    %p57 = scmp.eq.s32.totalorder %s16, 0
    %p58 = por %p56, %p57
    %p59 = scmp.ne.s32.totalorder %s47, %s48
    %p60 = scmp.eq.s32.totalorder %s17, 1
    %p61 = por %p59, %p60
    %p63 = scmp.ne.s32.totalorder %s48, %s62
    %p64 = scmp.eq.s32.totalorder %s17, 0
    %p65 = por %p63, %p64
    %s67 = sadd.s32 %s66, 1
    %p70 = scmp.eq.s32.totalorder %s11, 1
    %p71 = scmp.ne.s32.totalorder %s66, %s68
    %p72 = scmp.eq.s32.totalorder %s11, 0
    %p73 = por %p71, %p72
    %p74 = scmp.ne.s32.totalorder %s66, %s68
    %p75 = scmp.eq.s32.totalorder %s16, 1
    %p76 = por %p74, %p75
    %p77 = scmp.ne.s32.totalorder %s68, %s69
    %p78 = scmp.eq.s32.totalorder %s16, 0
    %p79 = por %p77, %p78
    %p80 = scmp.ne.s32.totalorder %s68, %s69
    %p81 = scmp.eq.s32.totalorder %s17, 1
    %p82 = por %p80, %p81
    %p84 = scmp.ne.s32.totalorder %s69, %s83
    %p85 = scmp.eq.s32.totalorder %s17, 0
    %p86 = por %p84, %p85
    %s88 = sadd.s32 %s87, 1
    %p91 = scmp.eq.s32.totalorder %s11, 1
    %p92 = scmp.ne.s32.totalorder %s87, %s89
    %p93 = scmp.eq.s32.totalorder %s11, 0
    %p94 = por %p92, %p93
    %p95 = scmp.ne.s32.totalorder %s87, %s89
    %p96 = scmp.eq.s32.totalorder %s16, 1
    %p97 = por %p95, %p96
    %p98 = scmp.ne.s32.totalorder %s89, %s90
    %p99 = scmp.eq.s32.totalorder %s16, 0
    %p100 = por %p98, %p99
    %p101 = scmp.ne.s32.totalorder %s89, %s90
    %p102 = scmp.eq.s32.totalorder %s17, 1
    %p103 = por %p101, %p102
    %p105 = scmp.ne.s32.totalorder %s90, %s104
    %p106 = scmp.eq.s32.totalorder %s17, 0
    %p107 = por %p105, %p106
    %s109 = sadd.s32 %s108, 1
    %p112 = scmp.eq.s32.totalorder %s11, 1
    %p113 = scmp.ne.s32.totalorder %s108, %s110
    %p114 = scmp.eq.s32.totalorder %s11, 0
    %p115 = por %p113, %p114
    %p116 = scmp.ne.s32.totalorder %s108, %s110
    %p117 = scmp.eq.s32.totalorder %s16, 1
    %p118 = por %p116, %p117
    %p119 = scmp.ne.s32.totalorder %s110, %s111
    %p120 = scmp.eq.s32.totalorder %s16, 0
    %p121 = por %p119, %p120
    %p122 = scmp.ne.s32.totalorder %s110, %s111
    %p123 = scmp.eq.s32.totalorder %s17, 1
    %p124 = por %p122, %p123
    %p126 = scmp.ne.s32.totalorder %s111, %s125
    %p127 = scmp.eq.s32.totalorder %s17, 0
    %p128 = por %p126, %p127
    %s129 = ssub.s32 %s11, %s18
    %p130 = scmp.eq.s32.totalorder %s129, 0
    %s132 = sadd.s32 %s131, 1
    %s133 = scalar_select %p130, %s131, %s132
    %p136 = pneg %p130
    %p137 = scmp.eq.s32.totalorder %s11, 1
    %p138 = por %p136, %p137
    %p139 = scmp.ne.s32.totalorder %s131, %s134
    %p140 = scmp.eq.s32.totalorder %s11, 0
    %p141 = por %p139, %p140
    %p142 = scmp.ne.s32.totalorder %s131, %s134
    %p143 = scmp.eq.s32.totalorder %s16, 1
    %p144 = por %p142, %p143
    %p145 = scmp.ne.s32.totalorder %s134, %s135
    %p146 = scmp.eq.s32.totalorder %s16, 0
    %p147 = por %p145, %p146
    %p148 = scmp.ne.s32.totalorder %s134, %s135
    %p149 = scmp.eq.s32.totalorder %s17, 1
    %p150 = por %p148, %p149
    %p152 = scmp.ne.s32.totalorder %s135, %s151
    %p153 = scmp.eq.s32.totalorder %s17, 0
    %p154 = por %p152, %p153
    %p155 = scmp.le.s32.totalorder 1, %s11
    %p156 = scmp.lt.s32.totalorder %s11, 3
    %p157 = pnand %p155, %p156
    %p158 = pneg %p157
    // Predicated region
    $region9: #{plot_type_classifier.1} parent=5 // pred_check
      _
    $region10: #{plot_type_classifier.1} parent=5 // pred_check_branch
      %160 = sbr.rel (%p157) target = $region12
    $region11: #{plot_type_classifier.1} parent=5 // pred_region
      %s161 = ssub.s32 %s11, 1
      // Predicated region
      $region13: #{plot_type_classifier.1} parent=11 // pred_check
        %p162 = pneg %p58
      $region14: #{plot_type_classifier.1} parent=11 // pred_check_branch
        %164 = sbr.rel (%p162) target = $region16
      $region15: #{plot_type_classifier.1} parent=11 // pred_region
        _
      $region16: #{plot_type_classifier.1} parent=11 // pred_fallthru
        _
      // Predicated region
      $region17: #{plot_type_classifier.1} parent=11 // pred_check
        %p165 = pneg %p79
      $region18: #{plot_type_classifier.1} parent=11 // pred_check_branch
        %167 = sbr.rel (%p165) target = $region20
      $region19: #{plot_type_classifier.1} parent=11 // pred_region
        _
      $region20: #{plot_type_classifier.1} parent=11 // pred_fallthru
        _
      // Predicated region
      $region21: #{plot_type_classifier.1} parent=11 // pred_check
        %p168 = pneg %p100
      $region22: #{plot_type_classifier.1} parent=11 // pred_check_branch
        %170 = sbr.rel (%p168) target = $region24
      $region23: #{plot_type_classifier.1} parent=11 // pred_region
        _
      $region24: #{plot_type_classifier.1} parent=11 // pred_fallthru
        _
      // Predicated region
      $region25: #{plot_type_classifier.1} parent=11 // pred_check
        %p171 = pneg %p121
      $region26: #{plot_type_classifier.1} parent=11 // pred_check_branch
        %173 = sbr.rel (%p171) target = $region28
      $region27: #{plot_type_classifier.1} parent=11 // pred_region
        _
      $region28: #{plot_type_classifier.1} parent=11 // pred_fallthru
        _
    $region12: #{plot_type_classifier.1} parent=5 // pred_fallthru
      _
    %p174 = scmp.lt.s32.totalorder %s11, 2
    // Predicated region
    $region29: #{plot_type_classifier.1} parent=5 // pred_check
      %p175 = pneg %p174
    $region30: #{plot_type_classifier.1} parent=5 // pred_check_branch
      %177 = sbr.rel (%p175) target = $region32
    $region31: #{plot_type_classifier.1} parent=5 // pred_region
      // Predicated region
      $region33: #{plot_type_classifier.1} parent=31 // pred_check
        %p178 = pneg %p31
      $region34: #{plot_type_classifier.1} parent=31 // pred_check_branch
        %180 = sbr.rel (%p178) target = $region36
      $region35: #{plot_type_classifier.1} parent=31 // pred_region
        %p181 = scmp.lt.s32.totalorder %s11, 1
        %s182 = scalar_select %p181, %s11, 1
        %s183 = smul.addr %s182, 8
        %s184 = scalar_lea.vmem %s0, %s183
      $region36: #{plot_type_classifier.1} parent=31 // pred_fallthru
        _
    $region32: #{plot_type_classifier.1} parent=5 // pred_fallthru
      _
    %p185 = scmp.le.s32.totalorder 1, %s11
    %p186 = scmp.lt.s32.totalorder %s11, 3
    %p187 = pnand %p185, %p186
    %p188 = pneg %p187
    // Predicated region
    $region37: #{plot_type_classifier.1} parent=5 // pred_check
      _
    $region38: #{plot_type_classifier.1} parent=5 // pred_check_branch
      %190 = sbr.rel (%p187) target = $region40
    $region39: #{plot_type_classifier.1} parent=5 // pred_region
      %s191 = ssub.s32 %s11, 1
      %p192 = scmp.lt.s32.totalorder %s16, 1
      %s193 = scalar_select %p192, %s16, 1
      %s194 = smul.addr %s193, 8
      %s195 = scalar_lea.vmem %s0, %s194
      %p196 = pneg %p37
      %p197 = pneg %p34
      %p198 = pneg %p58
      %p199 = pneg %p55
      %p200 = pneg %p79
      %p201 = pneg %p76
      %p202 = pneg %p100
      %p203 = pneg %p97
      %p204 = pneg %p121
      %p205 = pneg %p118
      %p206 = pneg %p147
      %p207 = pneg %p144
      %p208 = scmp.lt.s32.totalorder %s16, 1
      %s209 = scalar_select %p208, %s16, 1
      %s210 = smul.addr %s209, 4
      %s211 = scalar_lea.vmem %s5, %s210
      %p212 = scmp.lt.s32.totalorder %s16, 1
      %s213 = scalar_select %p212, %s16, 1
      %s214 = smul.addr %s213, 8
      %s215 = scalar_lea.vmem %s0, %s214
      %p216 = scmp.lt.s32.totalorder %s16, 1
      %s217 = scalar_select %p216, %s16, 1
      %s218 = smul.addr %s217, 4
      %s219 = scalar_lea.vmem %s5, %s218
      %v220 = vld [vmem:[%s215] sm:$0x1f]
      %v221 = vld [vmem:[%s1] sm:$0xff]
      %v222 = vld [vmem:[%s1 + $0x8] sm:$0xff]
      %v223 = vld [vmem:[%s2] sm:$0xff]
      %v224 = vld [vmem:[%s2 + $0x8] sm:$0xff]
      %226 = vset.pattern.permute.xlu0 0
      %227 = vperm.xlu0 %226, %v223
      %v228 = vpop.permute.xlu0 %227
      %231 = vset.pattern.permute.xlu0 0
      %232 = vperm.xlu0 %231, %v224
      %v233 = vpop.permute.xlu0 %232
      %vm235 = vcmask 39936
      %v237 = vsel %vm235, %v221, 0
      %v240 = vsel %vm235, %v222, 0
      %vm242 = vcmask 1044480
      %v244 = vsel %vm242, %v220, 0
      %246 = vmatprep.subr.mxu0 0.0
      %247 = vmatpush1.msra.mxu0 0.0
      %248 = vmatprep.subr.mxu0 0.0
      %249 = vmatpush1.msra.mxu0 0.0
      %250 = vmatprep.subr.mxu0 0.0
      %251 = vmatpush1.msra.mxu0 0.0
      %252 = vmatprep.subr.mxu0 0.0
      %253 = vmatpush1.msra.mxu0 0.0
      %254 = vmatprep.subr.mxu0 0.0
      %255 = vmatpush1.msra.mxu0 0.0
      %256 = vmatprep.subr.mxu0 0.0
      %257 = vmatpush1.msra.mxu0 0.0
      %258 = vmatprep.subr.mxu0 0.0
      %259 = vmatpush1.msra.mxu0 0.0
      %260 = vmatprep.subr.mxu0 0.0
      %261 = vmatpush1.msra.mxu0 0.0
      %262 = vmatprep.subr.mxu0 0.0
      %263 = vmatpush1.msra.mxu0 0.0
      %264 = vmatprep.subr.mxu0 0.0
      %265 = vmatpush1.msra.mxu0 0.0
      %266 = vmatprep.subr.mxu0 0.0
      %267 = vmatpush1.msra.mxu0 0.0
      %268 = vmatprep.subr.mxu0 0.0
      %269 = vmatpush1.msra.mxu0 0.0
      %270 = vmatprep.subr.mxu0 0.0
      %271 = vmatpush1.msra.mxu0 0.0
      %272 = vmatprep.subr.mxu0 0.0
      %273 = vmatpush1.msra.mxu0 0.0
      %274 = vmatprep.subr.mxu0 0.0
      %275 = vmatpush1.msra.mxu0 0.0
      %276 = vmatprep.subr.mxu0 0.0
      %v277 = vand.u32 %v244, 4294901760
      %278 = vmatpush1.msra.mxu0 %v277
      %279 = vmatprep.subr.mxu0 0.0
      %280 = vmatpush2.msra.mxu0 0.0
      %281 = vmatprep.subr.mxu0 0.0
      %282 = vmatpush2.msra.mxu0 0.0
      %283 = vmatprep.subr.mxu0 0.0
      %284 = vmatpush2.msra.mxu0 0.0
      %285 = vmatprep.subr.mxu0 0.0
      %286 = vmatpush2.msra.mxu0 0.0
      %287 = vmatprep.subr.mxu0 0.0
      %288 = vmatpush2.msra.mxu0 0.0
      %289 = vmatprep.subr.mxu0 0.0
      %290 = vmatpush2.msra.mxu0 0.0
      %291 = vmatprep.subr.mxu0 0.0
      %292 = vmatpush2.msra.mxu0 0.0
      %293 = vmatprep.subr.mxu0 0.0
      %294 = vmatpush2.msra.mxu0 0.0
      %295 = vmatprep.subr.mxu0 0.0
      %296 = vmatpush2.msra.mxu0 0.0
      %297 = vmatprep.subr.mxu0 0.0
      %298 = vmatpush2.msra.mxu0 0.0
      %299 = vmatprep.subr.mxu0 0.0
      %300 = vmatpush2.msra.mxu0 0.0
      %301 = vmatprep.subr.mxu0 0.0
      %302 = vmatpush2.msra.mxu0 0.0
      %303 = vmatprep.subr.mxu0 0.0
      %304 = vmatpush2.msra.mxu0 0.0
      %305 = vmatprep.subr.mxu0 0.0
      %306 = vmatpush2.msra.mxu0 0.0
      %307 = vmatprep.subr.mxu0 0.0
      %308 = vmatpush2.msra.mxu0 0.0
      %309 = vmatprep.subr.mxu0 0.0
      %310 = vmatpush2.msra.mxu0 0.0
      %311 = vmatprep.mubr.f32.mxu0 0.0
      %v312 = vand.u32 %v237, 4294901760
      %v313 = vsub.f32 %v237, %v312
      %v314 = vand.u32 %v313, 4294901760
      %v315 = vsub.f32 %v313, %v314
      %v316 = vand.u32 %v315, 4294901760
      %317 = vmatmul.mubr.f32.gmra.mxu0 %v316
      %v318 = vpop.f32.mrf.mxu0
      %v319 = vadd.f32 %v228, %v318
      %v320 = vpop.f32.mrf.mxu0
      %321 = vmatprep.mubr.f32.mxu0 0.0
      %v322 = vand.u32 %v240, 4294901760
      %v323 = vsub.f32 %v240, %v322
      %v324 = vand.u32 %v323, 4294901760
      %v325 = vsub.f32 %v323, %v324
      %v326 = vand.u32 %v325, 4294901760
      %327 = vmatmul.mubr.f32.gmra.mxu0 %v326
      %v328 = vpop.f32.mrf.mxu0
      %v329 = vadd.f32 %v233, %v328
      %v330 = vpop.f32.mrf.mxu0
      %331 = vdwg.mxu0
      %332 = vmatprep.subr.mxu0 0.0
      %333 = vmatpush1.msra.mxu0 0.0
      %334 = vmatprep.subr.mxu0 0.0
      %335 = vmatpush1.msra.mxu0 0.0
      %336 = vmatprep.subr.mxu0 0.0
      %337 = vmatpush1.msra.mxu0 0.0
      %338 = vmatprep.subr.mxu0 0.0
      %339 = vmatpush1.msra.mxu0 0.0
      %340 = vmatprep.subr.mxu0 0.0
      %341 = vmatpush1.msra.mxu0 0.0
      %342 = vmatprep.subr.mxu0 0.0
      %343 = vmatpush1.msra.mxu0 0.0
      %344 = vmatprep.subr.mxu0 0.0
      %345 = vmatpush1.msra.mxu0 0.0
      %346 = vmatprep.subr.mxu0 0.0
      %347 = vmatpush1.msra.mxu0 0.0
      %348 = vmatprep.subr.mxu0 0.0
      %349 = vmatpush1.msra.mxu0 0.0
      %350 = vmatprep.subr.mxu0 0.0
      %351 = vmatpush1.msra.mxu0 0.0
      %352 = vmatprep.subr.mxu0 0.0
      %353 = vmatpush1.msra.mxu0 0.0
      %354 = vmatprep.subr.mxu0 0.0
      %355 = vmatpush1.msra.mxu0 0.0
      %356 = vmatprep.subr.mxu0 0.0
      %357 = vmatpush1.msra.mxu0 0.0
      %358 = vmatprep.subr.mxu0 0.0
      %359 = vmatpush1.msra.mxu0 0.0
      %360 = vmatprep.subr.mxu0 0.0
      %361 = vmatpush1.msra.mxu0 0.0
      %362 = vmatprep.subr.mxu0 0.0
      %v363 = vand.u32 %v244, 4294901760
      %v364 = vsub.f32 %v244, %v363
      %v365 = vand.u32 %v364, 4294901760
      %v366 = vsub.f32 %v364, %v365
      %v367 = vand.u32 %v366, 4294901760
      %368 = vmatpush1.msra.mxu0 %v367
      %369 = vmatprep.subr.mxu0 0.0
      %370 = vmatpush2.msra.mxu0 0.0
      %371 = vmatprep.subr.mxu0 0.0
      %372 = vmatpush2.msra.mxu0 0.0
      %373 = vmatprep.subr.mxu0 0.0
      %374 = vmatpush2.msra.mxu0 0.0
      %375 = vmatprep.subr.mxu0 0.0
      %376 = vmatpush2.msra.mxu0 0.0
      %377 = vmatprep.subr.mxu0 0.0
      %378 = vmatpush2.msra.mxu0 0.0
      %379 = vmatprep.subr.mxu0 0.0
      %380 = vmatpush2.msra.mxu0 0.0
      %381 = vmatprep.subr.mxu0 0.0
      %382 = vmatpush2.msra.mxu0 0.0
      %383 = vmatprep.subr.mxu0 0.0
      %384 = vmatpush2.msra.mxu0 0.0
      %385 = vmatprep.subr.mxu0 0.0
      %386 = vmatpush2.msra.mxu0 0.0
      %387 = vmatprep.subr.mxu0 0.0
      %388 = vmatpush2.msra.mxu0 0.0
      %389 = vmatprep.subr.mxu0 0.0
      %390 = vmatpush2.msra.mxu0 0.0
      %391 = vmatprep.subr.mxu0 0.0
      %392 = vmatpush2.msra.mxu0 0.0
      %393 = vmatprep.subr.mxu0 0.0
      %394 = vmatpush2.msra.mxu0 0.0
      %395 = vmatprep.subr.mxu0 0.0
      %396 = vmatpush2.msra.mxu0 0.0
      %397 = vmatprep.subr.mxu0 0.0
      %398 = vmatpush2.msra.mxu0 0.0
      %399 = vmatprep.subr.mxu0 0.0
      %400 = vmatpush2.msra.mxu0 0.0
      %401 = vmatprep.mubr.f32.mxu0 0.0
      %v402 = vand.u32 %v237, 4294901760
      %403 = vmatmul.mubr.f32.gmra.mxu0 %v402
      %v404 = vpop.f32.mrf.mxu0
      %v405 = vadd.f32 %v319, %v404
      %v406 = vpop.f32.mrf.mxu0
      %407 = vmatprep.mubr.f32.mxu0 0.0
      %v408 = vand.u32 %v240, 4294901760
      %409 = vmatmul.mubr.f32.gmra.mxu0 %v408
      %v410 = vpop.f32.mrf.mxu0
      %v411 = vadd.f32 %v329, %v410
      %v412 = vpop.f32.mrf.mxu0
      %413 = vdwg.mxu0
      %414 = vmatprep.subr.mxu0 0.0
      %415 = vmatpush1.msra.mxu0 0.0
      %416 = vmatprep.subr.mxu0 0.0
      %417 = vmatpush1.msra.mxu0 0.0
      %418 = vmatprep.subr.mxu0 0.0
      %419 = vmatpush1.msra.mxu0 0.0
      %420 = vmatprep.subr.mxu0 0.0
      %421 = vmatpush1.msra.mxu0 0.0
      %422 = vmatprep.subr.mxu0 0.0
      %423 = vmatpush1.msra.mxu0 0.0
      %424 = vmatprep.subr.mxu0 0.0
      %425 = vmatpush1.msra.mxu0 0.0
      %426 = vmatprep.subr.mxu0 0.0
      %427 = vmatpush1.msra.mxu0 0.0
      %428 = vmatprep.subr.mxu0 0.0
      %429 = vmatpush1.msra.mxu0 0.0
      %430 = vmatprep.subr.mxu0 0.0
      %431 = vmatpush1.msra.mxu0 0.0
      %432 = vmatprep.subr.mxu0 0.0
      %433 = vmatpush1.msra.mxu0 0.0
      %434 = vmatprep.subr.mxu0 0.0
      %435 = vmatpush1.msra.mxu0 0.0
      %436 = vmatprep.subr.mxu0 0.0
      %437 = vmatpush1.msra.mxu0 0.0
      %438 = vmatprep.subr.mxu0 0.0
      %439 = vmatpush1.msra.mxu0 0.0
      %440 = vmatprep.subr.mxu0 0.0
      %441 = vmatpush1.msra.mxu0 0.0
      %442 = vmatprep.subr.mxu0 0.0
      %443 = vmatpush1.msra.mxu0 0.0
      %444 = vmatprep.subr.mxu0 0.0
      %v445 = vand.u32 %v244, 4294901760
      %v446 = vsub.f32 %v244, %v445
      %447 = vmatpush1.msra.mxu0 %v446
      %448 = vmatprep.subr.mxu0 0.0
      %449 = vmatpush2.msra.mxu0 0.0
      %450 = vmatprep.subr.mxu0 0.0
      %451 = vmatpush2.msra.mxu0 0.0
      %452 = vmatprep.subr.mxu0 0.0
      %453 = vmatpush2.msra.mxu0 0.0
      %454 = vmatprep.subr.mxu0 0.0
      %455 = vmatpush2.msra.mxu0 0.0
      %456 = vmatprep.subr.mxu0 0.0
      %457 = vmatpush2.msra.mxu0 0.0
      %458 = vmatprep.subr.mxu0 0.0
      %459 = vmatpush2.msra.mxu0 0.0
      %460 = vmatprep.subr.mxu0 0.0
      %461 = vmatpush2.msra.mxu0 0.0
      %462 = vmatprep.subr.mxu0 0.0
      %463 = vmatpush2.msra.mxu0 0.0
      %464 = vmatprep.subr.mxu0 0.0
      %465 = vmatpush2.msra.mxu0 0.0
      %466 = vmatprep.subr.mxu0 0.0
      %467 = vmatpush2.msra.mxu0 0.0
      %468 = vmatprep.subr.mxu0 0.0
      %469 = vmatpush2.msra.mxu0 0.0
      %470 = vmatprep.subr.mxu0 0.0
      %471 = vmatpush2.msra.mxu0 0.0
      %472 = vmatprep.subr.mxu0 0.0
      %473 = vmatpush2.msra.mxu0 0.0
      %474 = vmatprep.subr.mxu0 0.0
      %475 = vmatpush2.msra.mxu0 0.0
      %476 = vmatprep.subr.mxu0 0.0
      %477 = vmatpush2.msra.mxu0 0.0
      %478 = vmatprep.subr.mxu0 0.0
      %479 = vmatpush2.msra.mxu0 0.0
      %480 = vmatprep.mubr.f32.mxu0 0.0
      %v481 = vand.u32 %v237, 4294901760
      %v482 = vsub.f32 %v237, %v481
      %483 = vmatmul.mubr.f32.gmra.mxu0 %v482
      %v484 = vpop.f32.mrf.mxu0
      %v485 = vadd.f32 %v405, %v484
      %v486 = vpop.f32.mrf.mxu0
      %487 = vmatprep.mubr.f32.mxu0 0.0
      %v488 = vand.u32 %v240, 4294901760
      %v489 = vsub.f32 %v240, %v488
      %490 = vmatmul.mubr.f32.gmra.mxu0 %v489
      %v491 = vpop.f32.mrf.mxu0
      %v492 = vadd.f32 %v411, %v491
      %v493 = vpop.f32.mrf.mxu0
      %494 = vdwg.mxu0
      %495 = vmatprep.subr.mxu0 0.0
      %496 = vmatpush1.msra.mxu0 0.0
      %497 = vmatprep.subr.mxu0 0.0
      %498 = vmatpush1.msra.mxu0 0.0
      %499 = vmatprep.subr.mxu0 0.0
      %500 = vmatpush1.msra.mxu0 0.0
      %501 = vmatprep.subr.mxu0 0.0
      %502 = vmatpush1.msra.mxu0 0.0
      %503 = vmatprep.subr.mxu0 0.0
      %504 = vmatpush1.msra.mxu0 0.0
      %505 = vmatprep.subr.mxu0 0.0
      %506 = vmatpush1.msra.mxu0 0.0
      %507 = vmatprep.subr.mxu0 0.0
      %508 = vmatpush1.msra.mxu0 0.0
      %509 = vmatprep.subr.mxu0 0.0
      %510 = vmatpush1.msra.mxu0 0.0
      %511 = vmatprep.subr.mxu0 0.0
      %512 = vmatpush1.msra.mxu0 0.0
      %513 = vmatprep.subr.mxu0 0.0
      %514 = vmatpush1.msra.mxu0 0.0
      %515 = vmatprep.subr.mxu0 0.0
      %516 = vmatpush1.msra.mxu0 0.0
      %517 = vmatprep.subr.mxu0 0.0
      %518 = vmatpush1.msra.mxu0 0.0
      %519 = vmatprep.subr.mxu0 0.0
      %520 = vmatpush1.msra.mxu0 0.0
      %521 = vmatprep.subr.mxu0 0.0
      %522 = vmatpush1.msra.mxu0 0.0
      %523 = vmatprep.subr.mxu0 0.0
      %524 = vmatpush1.msra.mxu0 0.0
      %525 = vmatprep.subr.mxu0 0.0
      %v526 = vand.u32 %v244, 4294901760
      %527 = vmatpush1.msra.mxu0 %v526
      %528 = vmatprep.subr.mxu0 0.0
      %529 = vmatpush2.msra.mxu0 0.0
      %530 = vmatprep.subr.mxu0 0.0
      %531 = vmatpush2.msra.mxu0 0.0
      %532 = vmatprep.subr.mxu0 0.0
      %533 = vmatpush2.msra.mxu0 0.0
      %534 = vmatprep.subr.mxu0 0.0
      %535 = vmatpush2.msra.mxu0 0.0
      %536 = vmatprep.subr.mxu0 0.0
      %537 = vmatpush2.msra.mxu0 0.0
      %538 = vmatprep.subr.mxu0 0.0
      %539 = vmatpush2.msra.mxu0 0.0
      %540 = vmatprep.subr.mxu0 0.0
      %541 = vmatpush2.msra.mxu0 0.0
      %542 = vmatprep.subr.mxu0 0.0
      %543 = vmatpush2.msra.mxu0 0.0
      %544 = vmatprep.subr.mxu0 0.0
      %545 = vmatpush2.msra.mxu0 0.0
      %546 = vmatprep.subr.mxu0 0.0
      %547 = vmatpush2.msra.mxu0 0.0
      %548 = vmatprep.subr.mxu0 0.0
      %549 = vmatpush2.msra.mxu0 0.0
      %550 = vmatprep.subr.mxu0 0.0
      %551 = vmatpush2.msra.mxu0 0.0
      %552 = vmatprep.subr.mxu0 0.0
      %553 = vmatpush2.msra.mxu0 0.0
      %554 = vmatprep.subr.mxu0 0.0
      %555 = vmatpush2.msra.mxu0 0.0
      %556 = vmatprep.subr.mxu0 0.0
      %557 = vmatpush2.msra.mxu0 0.0
      %558 = vmatprep.subr.mxu0 0.0
      %559 = vmatpush2.msra.mxu0 0.0
      %560 = vmatprep.mubr.f32.mxu0 0.0
      %v561 = vand.u32 %v237, 4294901760
      %v562 = vsub.f32 %v237, %v561
      %v563 = vand.u32 %v562, 4294901760
      %564 = vmatmul.mubr.f32.gmra.mxu0 %v563
      %v565 = vpop.f32.mrf.mxu0
      %v566 = vadd.f32 %v485, %v565
      %v567 = vpop.f32.mrf.mxu0
      %568 = vmatprep.mubr.f32.mxu0 0.0
      %v569 = vand.u32 %v240, 4294901760
      %v570 = vsub.f32 %v240, %v569
      %v571 = vand.u32 %v570, 4294901760
      %572 = vmatmul.mubr.f32.gmra.mxu0 %v571
      %v573 = vpop.f32.mrf.mxu0
      %v574 = vadd.f32 %v492, %v573
      %v575 = vpop.f32.mrf.mxu0
      %576 = vdwg.mxu0
      %577 = vmatprep.subr.mxu0 0.0
      %578 = vmatpush1.msra.mxu0 0.0
      %579 = vmatprep.subr.mxu0 0.0
      %580 = vmatpush1.msra.mxu0 0.0
      %581 = vmatprep.subr.mxu0 0.0
      %582 = vmatpush1.msra.mxu0 0.0
      %583 = vmatprep.subr.mxu0 0.0
      %584 = vmatpush1.msra.mxu0 0.0
      %585 = vmatprep.subr.mxu0 0.0
      %586 = vmatpush1.msra.mxu0 0.0
      %587 = vmatprep.subr.mxu0 0.0
      %588 = vmatpush1.msra.mxu0 0.0
      %589 = vmatprep.subr.mxu0 0.0
      %590 = vmatpush1.msra.mxu0 0.0
      %591 = vmatprep.subr.mxu0 0.0
      %592 = vmatpush1.msra.mxu0 0.0
      %593 = vmatprep.subr.mxu0 0.0
      %594 = vmatpush1.msra.mxu0 0.0
      %595 = vmatprep.subr.mxu0 0.0
      %596 = vmatpush1.msra.mxu0 0.0
      %597 = vmatprep.subr.mxu0 0.0
      %598 = vmatpush1.msra.mxu0 0.0
      %599 = vmatprep.subr.mxu0 0.0
      %600 = vmatpush1.msra.mxu0 0.0
      %601 = vmatprep.subr.mxu0 0.0
      %602 = vmatpush1.msra.mxu0 0.0
      %603 = vmatprep.subr.mxu0 0.0
      %604 = vmatpush1.msra.mxu0 0.0
      %605 = vmatprep.subr.mxu0 0.0
      %606 = vmatpush1.msra.mxu0 0.0
      %607 = vmatprep.subr.mxu0 0.0
      %v608 = vand.u32 %v244, 4294901760
      %v609 = vsub.f32 %v244, %v608
      %v610 = vand.u32 %v609, 4294901760
      %611 = vmatpush1.msra.mxu0 %v610
      %612 = vmatprep.subr.mxu0 0.0
      %613 = vmatpush2.msra.mxu0 0.0
      %614 = vmatprep.subr.mxu0 0.0
      %615 = vmatpush2.msra.mxu0 0.0
      %616 = vmatprep.subr.mxu0 0.0
      %617 = vmatpush2.msra.mxu0 0.0
      %618 = vmatprep.subr.mxu0 0.0
      %619 = vmatpush2.msra.mxu0 0.0
      %620 = vmatprep.subr.mxu0 0.0
      %621 = vmatpush2.msra.mxu0 0.0
      %622 = vmatprep.subr.mxu0 0.0
      %623 = vmatpush2.msra.mxu0 0.0
      %624 = vmatprep.subr.mxu0 0.0
      %625 = vmatpush2.msra.mxu0 0.0
      %626 = vmatprep.subr.mxu0 0.0
      %627 = vmatpush2.msra.mxu0 0.0
      %628 = vmatprep.subr.mxu0 0.0
      %629 = vmatpush2.msra.mxu0 0.0
      %630 = vmatprep.subr.mxu0 0.0
      %631 = vmatpush2.msra.mxu0 0.0
      %632 = vmatprep.subr.mxu0 0.0
      %633 = vmatpush2.msra.mxu0 0.0
      %634 = vmatprep.subr.mxu0 0.0
      %635 = vmatpush2.msra.mxu0 0.0
      %636 = vmatprep.subr.mxu0 0.0
      %637 = vmatpush2.msra.mxu0 0.0
      %638 = vmatprep.subr.mxu0 0.0
      %639 = vmatpush2.msra.mxu0 0.0
      %640 = vmatprep.subr.mxu0 0.0
      %641 = vmatpush2.msra.mxu0 0.0
      %642 = vmatprep.subr.mxu0 0.0
      %643 = vmatpush2.msra.mxu0 0.0
      %644 = vmatprep.mubr.f32.mxu0 0.0
      %v645 = vand.u32 %v237, 4294901760
      %646 = vmatmul.mubr.f32.gmra.mxu0 %v645
      %v647 = vpop.f32.mrf.mxu0
      %v648 = vadd.f32 %v566, %v647
      %v649 = vpop.f32.mrf.mxu0
      %650 = vmatprep.mubr.f32.mxu0 0.0
      %v651 = vand.u32 %v240, 4294901760
      %652 = vmatmul.mubr.f32.gmra.mxu0 %v651
      %v653 = vpop.f32.mrf.mxu0
      %v654 = vadd.f32 %v574, %v653
      %v655 = vpop.f32.mrf.mxu0
      %656 = vdwg.mxu0
      %657 = vmatprep.subr.mxu0 0.0
      %658 = vmatpush1.msra.mxu0 0.0
      %659 = vmatprep.subr.mxu0 0.0
      %660 = vmatpush1.msra.mxu0 0.0
      %661 = vmatprep.subr.mxu0 0.0
      %662 = vmatpush1.msra.mxu0 0.0
      %663 = vmatprep.subr.mxu0 0.0
      %664 = vmatpush1.msra.mxu0 0.0
      %665 = vmatprep.subr.mxu0 0.0
      %666 = vmatpush1.msra.mxu0 0.0
      %667 = vmatprep.subr.mxu0 0.0
      %668 = vmatpush1.msra.mxu0 0.0
      %669 = vmatprep.subr.mxu0 0.0
      %670 = vmatpush1.msra.mxu0 0.0
      %671 = vmatprep.subr.mxu0 0.0
      %672 = vmatpush1.msra.mxu0 0.0
      %673 = vmatprep.subr.mxu0 0.0
      %674 = vmatpush1.msra.mxu0 0.0
      %675 = vmatprep.subr.mxu0 0.0
      %676 = vmatpush1.msra.mxu0 0.0
      %677 = vmatprep.subr.mxu0 0.0
      %678 = vmatpush1.msra.mxu0 0.0
      %679 = vmatprep.subr.mxu0 0.0
      %680 = vmatpush1.msra.mxu0 0.0
      %681 = vmatprep.subr.mxu0 0.0
      %682 = vmatpush1.msra.mxu0 0.0
      %683 = vmatprep.subr.mxu0 0.0
      %684 = vmatpush1.msra.mxu0 0.0
      %685 = vmatprep.subr.mxu0 0.0
      %686 = vmatpush1.msra.mxu0 0.0
      %687 = vmatprep.subr.mxu0 0.0
      %v688 = vand.u32 %v244, 4294901760
      %689 = vmatpush1.msra.mxu0 %v688
      %690 = vmatprep.subr.mxu0 0.0
      %691 = vmatpush2.msra.mxu0 0.0
      %692 = vmatprep.subr.mxu0 0.0
      %693 = vmatpush2.msra.mxu0 0.0
      %694 = vmatprep.subr.mxu0 0.0
      %695 = vmatpush2.msra.mxu0 0.0
      %696 = vmatprep.subr.mxu0 0.0
      %697 = vmatpush2.msra.mxu0 0.0
      %698 = vmatprep.subr.mxu0 0.0
      %699 = vmatpush2.msra.mxu0 0.0
      %700 = vmatprep.subr.mxu0 0.0
      %701 = vmatpush2.msra.mxu0 0.0
      %702 = vmatprep.subr.mxu0 0.0
      %703 = vmatpush2.msra.mxu0 0.0
      %704 = vmatprep.subr.mxu0 0.0
      %705 = vmatpush2.msra.mxu0 0.0
      %706 = vmatprep.subr.mxu0 0.0
      %707 = vmatpush2.msra.mxu0 0.0
      %708 = vmatprep.subr.mxu0 0.0
      %709 = vmatpush2.msra.mxu0 0.0
      %710 = vmatprep.subr.mxu0 0.0
      %711 = vmatpush2.msra.mxu0 0.0
      %712 = vmatprep.subr.mxu0 0.0
      %713 = vmatpush2.msra.mxu0 0.0
      %714 = vmatprep.subr.mxu0 0.0
      %715 = vmatpush2.msra.mxu0 0.0
      %716 = vmatprep.subr.mxu0 0.0
      %717 = vmatpush2.msra.mxu0 0.0
      %718 = vmatprep.subr.mxu0 0.0
      %719 = vmatpush2.msra.mxu0 0.0
      %720 = vmatprep.subr.mxu0 0.0
      %721 = vmatpush2.msra.mxu0 0.0
      %722 = vmatprep.mubr.f32.mxu0 0.0
      %v723 = vand.u32 %v237, 4294901760
      %724 = vmatmul.mubr.f32.gmra.mxu0 %v723
      %v725 = vpop.f32.mrf.mxu0
      %v726 = vadd.f32 %v648, %v725
      %v727 = vpop.f32.mrf.mxu0
      %728 = vmatprep.mubr.f32.mxu0 0.0
      %v729 = vand.u32 %v240, 4294901760
      %730 = vmatmul.mubr.f32.gmra.mxu0 %v729
      %v731 = vpop.f32.mrf.mxu0
      %v732 = vadd.f32 %v654, %v731
      %v733 = vpop.f32.mrf.mxu0
      %734 = vdwg.mxu0
      %v735 = vmax.f32 %v726, 0.0
      %v736 = vmax.f32 %v732, 0.0
      %v737 = vld [vmem:[%s3] sm:$0x7]
      %v738 = vld [vmem:[%s4] sm:$0x7]
      %740 = vset.pattern.permute.xlu0 0
      %741 = vperm.xlu0 %740, %v738
      %v742 = vpop.permute.xlu0 %741
      %vm744 = vcmask 130048
      %v746 = vsel %vm744, %v737, 0
      %748 = vmatprep.subr.mxu0 0.0
      %749 = vmatpush1.msra.mxu0 0.0
      %750 = vmatprep.subr.mxu0 0.0
      %751 = vmatpush1.msra.mxu0 0.0
      %752 = vmatprep.subr.mxu0 0.0
      %753 = vmatpush1.msra.mxu0 0.0
      %754 = vmatprep.subr.mxu0 0.0
      %755 = vmatpush1.msra.mxu0 0.0
      %756 = vmatprep.subr.mxu0 0.0
      %757 = vmatpush1.msra.mxu0 0.0
      %758 = vmatprep.subr.mxu0 0.0
      %759 = vmatpush1.msra.mxu0 0.0
      %760 = vmatprep.subr.mxu0 0.0
      %761 = vmatpush1.msra.mxu0 0.0
      %762 = vmatprep.subr.mxu0 0.0
      %763 = vmatpush1.msra.mxu0 0.0
      %764 = vmatprep.subr.mxu0 0.0
      %765 = vmatpush1.msra.mxu0 0.0
      %766 = vmatprep.subr.mxu0 0.0
      %767 = vmatpush1.msra.mxu0 0.0
      %768 = vmatprep.subr.mxu0 0.0
      %769 = vmatpush1.msra.mxu0 0.0
      %770 = vmatprep.subr.mxu0 0.0
      %771 = vmatpush1.msra.mxu0 0.0
      %772 = vmatprep.subr.mxu0 0.0
      %773 = vmatpush1.msra.mxu0 0.0
      %774 = vmatprep.subr.mxu0 0.0
      %775 = vmatpush1.msra.mxu0 0.0
      %776 = vmatprep.subr.mxu0 0.0
      %v777 = vand.u32 %v736, 4294901760
      %778 = vmatpush1.msra.mxu0 %v777
      %779 = vmatprep.subr.mxu0 0.0
      %v780 = vand.u32 %v735, 4294901760
      %781 = vmatpush1.msra.mxu0 %v780
      %782 = vmatprep.subr.mxu0 0.0
      %783 = vmatpush2.msra.mxu0 0.0
      %784 = vmatprep.subr.mxu0 0.0
      %785 = vmatpush2.msra.mxu0 0.0
      %786 = vmatprep.subr.mxu0 0.0
      %787 = vmatpush2.msra.mxu0 0.0
      %788 = vmatprep.subr.mxu0 0.0
      %789 = vmatpush2.msra.mxu0 0.0
      %790 = vmatprep.subr.mxu0 0.0
      %791 = vmatpush2.msra.mxu0 0.0
      %792 = vmatprep.subr.mxu0 0.0
      %793 = vmatpush2.msra.mxu0 0.0
      %794 = vmatprep.subr.mxu0 0.0
      %795 = vmatpush2.msra.mxu0 0.0
      %796 = vmatprep.subr.mxu0 0.0
      %797 = vmatpush2.msra.mxu0 0.0
      %798 = vmatprep.subr.mxu0 0.0
      %799 = vmatpush2.msra.mxu0 0.0
      %800 = vmatprep.subr.mxu0 0.0
      %801 = vmatpush2.msra.mxu0 0.0
      %802 = vmatprep.subr.mxu0 0.0
      %803 = vmatpush2.msra.mxu0 0.0
      %804 = vmatprep.subr.mxu0 0.0
      %805 = vmatpush2.msra.mxu0 0.0
      %806 = vmatprep.subr.mxu0 0.0
      %807 = vmatpush2.msra.mxu0 0.0
      %808 = vmatprep.subr.mxu0 0.0
      %809 = vmatpush2.msra.mxu0 0.0
      %810 = vmatprep.subr.mxu0 0.0
      %811 = vmatpush2.msra.mxu0 0.0
      %812 = vmatprep.subr.mxu0 0.0
      %813 = vmatpush2.msra.mxu0 0.0
      %814 = vmatprep.mubr.f32.mxu0 0.0
      %v815 = vand.u32 %v746, 4294901760
      %v816 = vsub.f32 %v746, %v815
      %v817 = vand.u32 %v816, 4294901760
      %v818 = vsub.f32 %v816, %v817
      %v819 = vand.u32 %v818, 4294901760
      %820 = vmatmul.mubr.f32.gmra.mxu0 %v819
      %v821 = vpop.f32.mrf.mxu0
      %v822 = vadd.f32 %v742, %v821
      %v823 = vpop.f32.mrf.mxu0
      %824 = vdwg.mxu0
      %825 = vmatprep.subr.mxu0 0.0
      %826 = vmatpush1.msra.mxu0 0.0
      %827 = vmatprep.subr.mxu0 0.0
      %828 = vmatpush1.msra.mxu0 0.0
      %829 = vmatprep.subr.mxu0 0.0
      %830 = vmatpush1.msra.mxu0 0.0
      %831 = vmatprep.subr.mxu0 0.0
      %832 = vmatpush1.msra.mxu0 0.0
      %833 = vmatprep.subr.mxu0 0.0
      %834 = vmatpush1.msra.mxu0 0.0
      %835 = vmatprep.subr.mxu0 0.0
      %836 = vmatpush1.msra.mxu0 0.0
      %837 = vmatprep.subr.mxu0 0.0
      %838 = vmatpush1.msra.mxu0 0.0
      %839 = vmatprep.subr.mxu0 0.0
      %840 = vmatpush1.msra.mxu0 0.0
      %841 = vmatprep.subr.mxu0 0.0
      %842 = vmatpush1.msra.mxu0 0.0
      %843 = vmatprep.subr.mxu0 0.0
      %844 = vmatpush1.msra.mxu0 0.0
      %845 = vmatprep.subr.mxu0 0.0
      %846 = vmatpush1.msra.mxu0 0.0
      %847 = vmatprep.subr.mxu0 0.0
      %848 = vmatpush1.msra.mxu0 0.0
      %849 = vmatprep.subr.mxu0 0.0
      %850 = vmatpush1.msra.mxu0 0.0
      %851 = vmatprep.subr.mxu0 0.0
      %852 = vmatpush1.msra.mxu0 0.0
      %853 = vmatprep.subr.mxu0 0.0
      %v854 = vand.u32 %v736, 4294901760
      %v855 = vsub.f32 %v736, %v854
      %v856 = vand.u32 %v855, 4294901760
      %v857 = vsub.f32 %v855, %v856
      %v858 = vand.u32 %v857, 4294901760
      %859 = vmatpush1.msra.mxu0 %v858
      %860 = vmatprep.subr.mxu0 0.0
      %v861 = vand.u32 %v735, 4294901760
      %v862 = vsub.f32 %v735, %v861
      %v863 = vand.u32 %v862, 4294901760
      %v864 = vsub.f32 %v862, %v863
      %v865 = vand.u32 %v864, 4294901760
      %866 = vmatpush1.msra.mxu0 %v865
      %867 = vmatprep.subr.mxu0 0.0
      %868 = vmatpush2.msra.mxu0 0.0
      %869 = vmatprep.subr.mxu0 0.0
      %870 = vmatpush2.msra.mxu0 0.0
      %871 = vmatprep.subr.mxu0 0.0
      %872 = vmatpush2.msra.mxu0 0.0
      %873 = vmatprep.subr.mxu0 0.0
      %874 = vmatpush2.msra.mxu0 0.0
      %875 = vmatprep.subr.mxu0 0.0
      %876 = vmatpush2.msra.mxu0 0.0
      %877 = vmatprep.subr.mxu0 0.0
      %878 = vmatpush2.msra.mxu0 0.0
      %879 = vmatprep.subr.mxu0 0.0
      %880 = vmatpush2.msra.mxu0 0.0
      %881 = vmatprep.subr.mxu0 0.0
      %882 = vmatpush2.msra.mxu0 0.0
      %883 = vmatprep.subr.mxu0 0.0
      %884 = vmatpush2.msra.mxu0 0.0
      %885 = vmatprep.subr.mxu0 0.0
      %886 = vmatpush2.msra.mxu0 0.0
      %887 = vmatprep.subr.mxu0 0.0
      %888 = vmatpush2.msra.mxu0 0.0
      %889 = vmatprep.subr.mxu0 0.0
      %890 = vmatpush2.msra.mxu0 0.0
      %891 = vmatprep.subr.mxu0 0.0
      %892 = vmatpush2.msra.mxu0 0.0
      %893 = vmatprep.subr.mxu0 0.0
      %894 = vmatpush2.msra.mxu0 0.0
      %895 = vmatprep.subr.mxu0 0.0
      %896 = vmatpush2.msra.mxu0 0.0
      %897 = vmatprep.subr.mxu0 0.0
      %898 = vmatpush2.msra.mxu0 0.0
      %899 = vmatprep.mubr.f32.mxu0 0.0
      %v900 = vand.u32 %v746, 4294901760
      %901 = vmatmul.mubr.f32.gmra.mxu0 %v900
      %v902 = vpop.f32.mrf.mxu0
      %v903 = vadd.f32 %v822, %v902
      %v904 = vpop.f32.mrf.mxu0
      %905 = vdwg.mxu0
      %906 = vmatprep.subr.mxu0 0.0
      %907 = vmatpush1.msra.mxu0 0.0
      %908 = vmatprep.subr.mxu0 0.0
      %909 = vmatpush1.msra.mxu0 0.0
      %910 = vmatprep.subr.mxu0 0.0
      %911 = vmatpush1.msra.mxu0 0.0
      %912 = vmatprep.subr.mxu0 0.0
      %913 = vmatpush1.msra.mxu0 0.0
      %914 = vmatprep.subr.mxu0 0.0
      %915 = vmatpush1.msra.mxu0 0.0
      %916 = vmatprep.subr.mxu0 0.0
      %917 = vmatpush1.msra.mxu0 0.0
      %918 = vmatprep.subr.mxu0 0.0
      %919 = vmatpush1.msra.mxu0 0.0
      %920 = vmatprep.subr.mxu0 0.0
      %921 = vmatpush1.msra.mxu0 0.0
      %922 = vmatprep.subr.mxu0 0.0
      %923 = vmatpush1.msra.mxu0 0.0
      %924 = vmatprep.subr.mxu0 0.0
      %925 = vmatpush1.msra.mxu0 0.0
      %926 = vmatprep.subr.mxu0 0.0
      %927 = vmatpush1.msra.mxu0 0.0
      %928 = vmatprep.subr.mxu0 0.0
      %929 = vmatpush1.msra.mxu0 0.0
      %930 = vmatprep.subr.mxu0 0.0
      %931 = vmatpush1.msra.mxu0 0.0
      %932 = vmatprep.subr.mxu0 0.0
      %933 = vmatpush1.msra.mxu0 0.0
      %934 = vmatprep.subr.mxu0 0.0
      %v935 = vand.u32 %v736, 4294901760
      %v936 = vsub.f32 %v736, %v935
      %937 = vmatpush1.msra.mxu0 %v936
      %938 = vmatprep.subr.mxu0 0.0
      %v939 = vand.u32 %v735, 4294901760
      %v940 = vsub.f32 %v735, %v939
      %941 = vmatpush1.msra.mxu0 %v940
      %942 = vmatprep.subr.mxu0 0.0
      %943 = vmatpush2.msra.mxu0 0.0
      %944 = vmatprep.subr.mxu0 0.0
      %945 = vmatpush2.msra.mxu0 0.0
      %946 = vmatprep.subr.mxu0 0.0
      %947 = vmatpush2.msra.mxu0 0.0
      %948 = vmatprep.subr.mxu0 0.0
      %949 = vmatpush2.msra.mxu0 0.0
      %950 = vmatprep.subr.mxu0 0.0
      %951 = vmatpush2.msra.mxu0 0.0
      %952 = vmatprep.subr.mxu0 0.0
      %953 = vmatpush2.msra.mxu0 0.0
      %954 = vmatprep.subr.mxu0 0.0
      %955 = vmatpush2.msra.mxu0 0.0
      %956 = vmatprep.subr.mxu0 0.0
      %957 = vmatpush2.msra.mxu0 0.0
      %958 = vmatprep.subr.mxu0 0.0
      %959 = vmatpush2.msra.mxu0 0.0
      %960 = vmatprep.subr.mxu0 0.0
      %961 = vmatpush2.msra.mxu0 0.0
      %962 = vmatprep.subr.mxu0 0.0
      %963 = vmatpush2.msra.mxu0 0.0
      %964 = vmatprep.subr.mxu0 0.0
      %965 = vmatpush2.msra.mxu0 0.0
      %966 = vmatprep.subr.mxu0 0.0
      %967 = vmatpush2.msra.mxu0 0.0
      %968 = vmatprep.subr.mxu0 0.0
      %969 = vmatpush2.msra.mxu0 0.0
      %970 = vmatprep.subr.mxu0 0.0
      %971 = vmatpush2.msra.mxu0 0.0
      %972 = vmatprep.subr.mxu0 0.0
      %973 = vmatpush2.msra.mxu0 0.0
      %974 = vmatprep.mubr.f32.mxu0 0.0
      %v975 = vand.u32 %v746, 4294901760
      %v976 = vsub.f32 %v746, %v975
      %977 = vmatmul.mubr.f32.gmra.mxu0 %v976
      %v978 = vpop.f32.mrf.mxu0
      %v979 = vadd.f32 %v903, %v978
      %v980 = vpop.f32.mrf.mxu0
      %981 = vdwg.mxu0
      %982 = vmatprep.subr.mxu0 0.0
      %983 = vmatpush1.msra.mxu0 0.0
      %984 = vmatprep.subr.mxu0 0.0
      %985 = vmatpush1.msra.mxu0 0.0
      %986 = vmatprep.subr.mxu0 0.0
      %987 = vmatpush1.msra.mxu0 0.0
      %988 = vmatprep.subr.mxu0 0.0
      %989 = vmatpush1.msra.mxu0 0.0
      %990 = vmatprep.subr.mxu0 0.0
      %991 = vmatpush1.msra.mxu0 0.0
      %992 = vmatprep.subr.mxu0 0.0
      %993 = vmatpush1.msra.mxu0 0.0
      %994 = vmatprep.subr.mxu0 0.0
      %995 = vmatpush1.msra.mxu0 0.0
      %996 = vmatprep.subr.mxu0 0.0
      %997 = vmatpush1.msra.mxu0 0.0
      %998 = vmatprep.subr.mxu0 0.0
      %999 = vmatpush1.msra.mxu0 0.0
      %1000 = vmatprep.subr.mxu0 0.0
      %1001 = vmatpush1.msra.mxu0 0.0
      %1002 = vmatprep.subr.mxu0 0.0
      %1003 = vmatpush1.msra.mxu0 0.0
      %1004 = vmatprep.subr.mxu0 0.0
      %1005 = vmatpush1.msra.mxu0 0.0
      %1006 = vmatprep.subr.mxu0 0.0
      %1007 = vmatpush1.msra.mxu0 0.0
      %1008 = vmatprep.subr.mxu0 0.0
      %1009 = vmatpush1.msra.mxu0 0.0
      %1010 = vmatprep.subr.mxu0 0.0
      %v1011 = vand.u32 %v736, 4294901760
      %1012 = vmatpush1.msra.mxu0 %v1011
      %1013 = vmatprep.subr.mxu0 0.0
      %v1014 = vand.u32 %v735, 4294901760
      %1015 = vmatpush1.msra.mxu0 %v1014
      %1016 = vmatprep.subr.mxu0 0.0
      %1017 = vmatpush2.msra.mxu0 0.0
      %1018 = vmatprep.subr.mxu0 0.0
      %1019 = vmatpush2.msra.mxu0 0.0
      %1020 = vmatprep.subr.mxu0 0.0
      %1021 = vmatpush2.msra.mxu0 0.0
      %1022 = vmatprep.subr.mxu0 0.0
      %1023 = vmatpush2.msra.mxu0 0.0
      %1024 = vmatprep.subr.mxu0 0.0
      %1025 = vmatpush2.msra.mxu0 0.0
      %1026 = vmatprep.subr.mxu0 0.0
      %1027 = vmatpush2.msra.mxu0 0.0
      %1028 = vmatprep.subr.mxu0 0.0
      %1029 = vmatpush2.msra.mxu0 0.0
      %1030 = vmatprep.subr.mxu0 0.0
      %1031 = vmatpush2.msra.mxu0 0.0
      %1032 = vmatprep.subr.mxu0 0.0
      %1033 = vmatpush2.msra.mxu0 0.0
      %1034 = vmatprep.subr.mxu0 0.0
      %1035 = vmatpush2.msra.mxu0 0.0
      %1036 = vmatprep.subr.mxu0 0.0
      %1037 = vmatpush2.msra.mxu0 0.0
      %1038 = vmatprep.subr.mxu0 0.0
      %1039 = vmatpush2.msra.mxu0 0.0
      %1040 = vmatprep.subr.mxu0 0.0
      %1041 = vmatpush2.msra.mxu0 0.0
      %1042 = vmatprep.subr.mxu0 0.0
      %1043 = vmatpush2.msra.mxu0 0.0
      %1044 = vmatprep.subr.mxu0 0.0
      %1045 = vmatpush2.msra.mxu0 0.0
      %1046 = vmatprep.subr.mxu0 0.0
      %1047 = vmatpush2.msra.mxu0 0.0
      %1048 = vmatprep.mubr.f32.mxu0 0.0
      %v1049 = vand.u32 %v746, 4294901760
      %v1050 = vsub.f32 %v746, %v1049
      %v1051 = vand.u32 %v1050, 4294901760
      %1052 = vmatmul.mubr.f32.gmra.mxu0 %v1051
      %v1053 = vpop.f32.mrf.mxu0
      %v1054 = vadd.f32 %v979, %v1053
      %v1055 = vpop.f32.mrf.mxu0
      %1056 = vdwg.mxu0
      %1057 = vmatprep.subr.mxu0 0.0
      %1058 = vmatpush1.msra.mxu0 0.0
      %1059 = vmatprep.subr.mxu0 0.0
      %1060 = vmatpush1.msra.mxu0 0.0
      %1061 = vmatprep.subr.mxu0 0.0
      %1062 = vmatpush1.msra.mxu0 0.0
      %1063 = vmatprep.subr.mxu0 0.0
      %1064 = vmatpush1.msra.mxu0 0.0
      %1065 = vmatprep.subr.mxu0 0.0
      %1066 = vmatpush1.msra.mxu0 0.0
      %1067 = vmatprep.subr.mxu0 0.0
      %1068 = vmatpush1.msra.mxu0 0.0
      %1069 = vmatprep.subr.mxu0 0.0
      %1070 = vmatpush1.msra.mxu0 0.0
      %1071 = vmatprep.subr.mxu0 0.0
      %1072 = vmatpush1.msra.mxu0 0.0
      %1073 = vmatprep.subr.mxu0 0.0
      %1074 = vmatpush1.msra.mxu0 0.0
      %1075 = vmatprep.subr.mxu0 0.0
      %1076 = vmatpush1.msra.mxu0 0.0
      %1077 = vmatprep.subr.mxu0 0.0
      %1078 = vmatpush1.msra.mxu0 0.0
      %1079 = vmatprep.subr.mxu0 0.0
      %1080 = vmatpush1.msra.mxu0 0.0
      %1081 = vmatprep.subr.mxu0 0.0
      %1082 = vmatpush1.msra.mxu0 0.0
      %1083 = vmatprep.subr.mxu0 0.0
      %1084 = vmatpush1.msra.mxu0 0.0
      %1085 = vmatprep.subr.mxu0 0.0
      %v1086 = vand.u32 %v736, 4294901760
      %v1087 = vsub.f32 %v736, %v1086
      %v1088 = vand.u32 %v1087, 4294901760
      %1089 = vmatpush1.msra.mxu0 %v1088
      %1090 = vmatprep.subr.mxu0 0.0
      %v1091 = vand.u32 %v735, 4294901760
      %v1092 = vsub.f32 %v735, %v1091
      %v1093 = vand.u32 %v1092, 4294901760
      %1094 = vmatpush1.msra.mxu0 %v1093
      %1095 = vmatprep.subr.mxu0 0.0
      %1096 = vmatpush2.msra.mxu0 0.0
      %1097 = vmatprep.subr.mxu0 0.0
      %1098 = vmatpush2.msra.mxu0 0.0
      %1099 = vmatprep.subr.mxu0 0.0
      %1100 = vmatpush2.msra.mxu0 0.0
      %1101 = vmatprep.subr.mxu0 0.0
      %1102 = vmatpush2.msra.mxu0 0.0
      %1103 = vmatprep.subr.mxu0 0.0
      %1104 = vmatpush2.msra.mxu0 0.0
      %1105 = vmatprep.subr.mxu0 0.0
      %1106 = vmatpush2.msra.mxu0 0.0
      %1107 = vmatprep.subr.mxu0 0.0
      %1108 = vmatpush2.msra.mxu0 0.0
      %1109 = vmatprep.subr.mxu0 0.0
      %1110 = vmatpush2.msra.mxu0 0.0
      %1111 = vmatprep.subr.mxu0 0.0
      %1112 = vmatpush2.msra.mxu0 0.0
      %1113 = vmatprep.subr.mxu0 0.0
      %1114 = vmatpush2.msra.mxu0 0.0
      %1115 = vmatprep.subr.mxu0 0.0
      %1116 = vmatpush2.msra.mxu0 0.0
      %1117 = vmatprep.subr.mxu0 0.0
      %1118 = vmatpush2.msra.mxu0 0.0
      %1119 = vmatprep.subr.mxu0 0.0
      %1120 = vmatpush2.msra.mxu0 0.0
      %1121 = vmatprep.subr.mxu0 0.0
      %1122 = vmatpush2.msra.mxu0 0.0
      %1123 = vmatprep.subr.mxu0 0.0
      %1124 = vmatpush2.msra.mxu0 0.0
      %1125 = vmatprep.subr.mxu0 0.0
      %1126 = vmatpush2.msra.mxu0 0.0
      %1127 = vmatprep.mubr.f32.mxu0 0.0
      %v1128 = vand.u32 %v746, 4294901760
      %1129 = vmatmul.mubr.f32.gmra.mxu0 %v1128
      %v1130 = vpop.f32.mrf.mxu0
      %v1131 = vadd.f32 %v1054, %v1130
      %v1132 = vpop.f32.mrf.mxu0
      %1133 = vdwg.mxu0
      %1134 = vmatprep.subr.mxu0 0.0
      %1135 = vmatpush1.msra.mxu0 0.0
      %1136 = vmatprep.subr.mxu0 0.0
      %1137 = vmatpush1.msra.mxu0 0.0
      %1138 = vmatprep.subr.mxu0 0.0
      %1139 = vmatpush1.msra.mxu0 0.0
      %1140 = vmatprep.subr.mxu0 0.0
      %1141 = vmatpush1.msra.mxu0 0.0
      %1142 = vmatprep.subr.mxu0 0.0
      %1143 = vmatpush1.msra.mxu0 0.0
      %1144 = vmatprep.subr.mxu0 0.0
      %1145 = vmatpush1.msra.mxu0 0.0
      %1146 = vmatprep.subr.mxu0 0.0
      %1147 = vmatpush1.msra.mxu0 0.0
      %1148 = vmatprep.subr.mxu0 0.0
      %1149 = vmatpush1.msra.mxu0 0.0
      %1150 = vmatprep.subr.mxu0 0.0
      %1151 = vmatpush1.msra.mxu0 0.0
      %1152 = vmatprep.subr.mxu0 0.0
      %1153 = vmatpush1.msra.mxu0 0.0
      %1154 = vmatprep.subr.mxu0 0.0
      %1155 = vmatpush1.msra.mxu0 0.0
      %1156 = vmatprep.subr.mxu0 0.0
      %1157 = vmatpush1.msra.mxu0 0.0
      %1158 = vmatprep.subr.mxu0 0.0
      %1159 = vmatpush1.msra.mxu0 0.0
      %1160 = vmatprep.subr.mxu0 0.0
      %1161 = vmatpush1.msra.mxu0 0.0
      %1162 = vmatprep.subr.mxu0 0.0
      %v1163 = vand.u32 %v736, 4294901760
      %1164 = vmatpush1.msra.mxu0 %v1163
      %1165 = vmatprep.subr.mxu0 0.0
      %v1166 = vand.u32 %v735, 4294901760
      %1167 = vmatpush1.msra.mxu0 %v1166
      %1168 = vmatprep.subr.mxu0 0.0
      %1169 = vmatpush2.msra.mxu0 0.0
      %1170 = vmatprep.subr.mxu0 0.0
      %1171 = vmatpush2.msra.mxu0 0.0
      %1172 = vmatprep.subr.mxu0 0.0
      %1173 = vmatpush2.msra.mxu0 0.0
      %1174 = vmatprep.subr.mxu0 0.0
      %1175 = vmatpush2.msra.mxu0 0.0
      %1176 = vmatprep.subr.mxu0 0.0
      %1177 = vmatpush2.msra.mxu0 0.0
      %1178 = vmatprep.subr.mxu0 0.0
      %1179 = vmatpush2.msra.mxu0 0.0
      %1180 = vmatprep.subr.mxu0 0.0
      %1181 = vmatpush2.msra.mxu0 0.0
      %1182 = vmatprep.subr.mxu0 0.0
      %1183 = vmatpush2.msra.mxu0 0.0
      %1184 = vmatprep.subr.mxu0 0.0
      %1185 = vmatpush2.msra.mxu0 0.0
      %1186 = vmatprep.subr.mxu0 0.0
      %1187 = vmatpush2.msra.mxu0 0.0
      %1188 = vmatprep.subr.mxu0 0.0
      %1189 = vmatpush2.msra.mxu0 0.0
      %1190 = vmatprep.subr.mxu0 0.0
      %1191 = vmatpush2.msra.mxu0 0.0
      %1192 = vmatprep.subr.mxu0 0.0
      %1193 = vmatpush2.msra.mxu0 0.0
      %1194 = vmatprep.subr.mxu0 0.0
      %1195 = vmatpush2.msra.mxu0 0.0
      %1196 = vmatprep.subr.mxu0 0.0
      %1197 = vmatpush2.msra.mxu0 0.0
      %1198 = vmatprep.subr.mxu0 0.0
      %1199 = vmatpush2.msra.mxu0 0.0
      %1200 = vmatprep.mubr.f32.mxu0 0.0
      %v1201 = vand.u32 %v746, 4294901760
      %1202 = vmatmul.mubr.f32.gmra.mxu0 %v1201
      %v1203 = vpop.f32.mrf.mxu0
      %v1204 = vadd.f32 %v1131, %v1203
      %v1205 = vpop.f32.mrf.mxu0
      %1206 = vdwg.mxu0
      %1207 = vst [vmem:[%s219] sm:$0x7] %v1204
      %p1208 = scmp.lt.s32.totalorder %s16, 1
      %s1209 = scalar_select %p1208, %s16, 1
      %s1210 = smul.addr %s1209, 4
      %s1211 = scalar_lea.vmem %s5, %s1210
      // Predicated region
      $region41: #{plot_type_classifier.1} parent=39 // pred_check
        %p1212 = pneg %p144
      $region42: #{plot_type_classifier.1} parent=39 // pred_check_branch
        %1214 = sbr.rel (%p1212) target = $region44
      $region43: #{plot_type_classifier.1} parent=39 // pred_region
        _
      $region44: #{plot_type_classifier.1} parent=39 // pred_fallthru
        _
    $region40: #{plot_type_classifier.1} parent=5 // pred_fallthru
      _
    %p1215 = scmp.le.s32.totalorder 2, %s11
    // Predicated region
    $region45: #{plot_type_classifier.1} parent=5 // pred_check
      %p1216 = pneg %p1215
    $region46: #{plot_type_classifier.1} parent=5 // pred_check_branch
      %1218 = sbr.rel (%p1216) target = $region48
    $region47: #{plot_type_classifier.1} parent=5 // pred_region
      %s1219 = ssub.s32 %s11, 2
      // Predicated region
      $region49: #{plot_type_classifier.1} parent=47 // pred_check
        %p1220 = pneg %p150
      $region50: #{plot_type_classifier.1} parent=47 // pred_check_branch
        %1222 = sbr.rel (%p1220) target = $region52
      $region51: #{plot_type_classifier.1} parent=47 // pred_region
        %p1223 = scmp.lt.s32.totalorder %s17, 1
        %s1224 = scalar_select %p1223, %s17, 1
        %s1225 = smul.addr %s1224, 4
        %s1226 = scalar_lea.vmem %s5, %s1225
      $region52: #{plot_type_classifier.1} parent=47 // pred_fallthru
        _
    $region48: #{plot_type_classifier.1} parent=5 // pred_fallthru
      _
  $region6: #{plot_type_classifier.1} parent=0 // loop_footer
    %s15 = sadd.s32 1, %s11
  $region7: #{plot_type_classifier.1} parent=0 // loop_footer_branch
    %10 = sbr.rel target = $region3
  $region8: #{plot_type_classifier.1} parent=0 // loop_exit
    _

</llo_original>
